<compile_context>
chip_gen: v7x
topology: tpu7x:2x2x1
jax: 0.10.0
libtpu: 0.0.40
codegen_flags: <defaults>
</compile_context>

<pallas_src>
import functools

import jax
import jax.numpy as jnp
from jax.experimental import pallas as pl
from jax.experimental.pallas import tpu as pltpu


def _round_down(v, m):
    return (v // m) * m


def _default_vmem_limit_bytes():
    """Per-generation scoped-VMEM limit: ~half of physical, clamped to 32-48 MiB."""
    phys = 64 << 20  # conservative fallback (v7x per-TensorCore VMEM)
    try:
        info = pltpu.get_tpu_info()
        cap = getattr(info, "vmem_capacity_bytes", None)
        if cap:
            phys = int(cap)
    except Exception:
        pass
    return int(min(max(32 << 20, phys // 2), 48 << 20))


def channel_attention_kernel(x_ref, w1_ref, w2_ref, o_ref, mx_ref, sm_ref,
                             *, hw, tile, has_tail):
    # x_ref : (1, C, tile) VMEM tile (batch n, spatial chunk k)
    # w1_ref: (C_red, C)   first 1x1 conv weight (resident in VMEM)
    # w2_ref: (C, C_red)   second 1x1 conv weight (resident in VMEM)
    # o_ref : (1, C, 1)    sigmoid(se(max) + se(avg)) for batch element n
    # mx_ref: (C, 1)       running spatial max   (f32 scratch)
    # sm_ref: (C, 1)       running spatial sum   (f32 scratch)
    k = pl.program_id(1)
    last = pl.num_programs(1) - 1

    @pl.when(k == 0)
    def _init():
        mx_ref[...] = jnp.full(mx_ref.shape, -jnp.inf, dtype=mx_ref.dtype)
        sm_ref[...] = jnp.zeros(sm_ref.shape, dtype=sm_ref.dtype)

    x = x_ref[0].astype(jnp.float32)                       # (C, tile)

    if has_tail:
        # Only the final spatial step overhangs HW: accumulate unmasked on all
        # earlier steps, run the masked path exactly once on the last step.
        @pl.when(k < last)
        def _accum_full():
            mx_ref[...] = jnp.maximum(mx_ref[...],
                                      jnp.max(x, axis=-1, keepdims=True))
            sm_ref[...] = sm_ref[...] + jnp.sum(x, axis=-1, keepdims=True)

        @pl.when(k == last)
        def _accum_masked():
            valid = hw - k * tile                          # scalar (traced)
            lane = jax.lax.broadcasted_iota(jnp.int32, (1, tile), 1)
            in_range = lane < valid                        # (1, tile) -> bcast over C
            x_max = jnp.where(in_range, x, -jnp.inf)
            x_sum = jnp.where(in_range, x, 0.0)
            mx_ref[...] = jnp.maximum(mx_ref[...],
                                      jnp.max(x_max, axis=-1, keepdims=True))
            sm_ref[...] = sm_ref[...] + jnp.sum(x_sum, axis=-1, keepdims=True)
    else:
        mx_ref[...] = jnp.maximum(mx_ref[...],
                                  jnp.max(x, axis=-1, keepdims=True))
        sm_ref[...] = sm_ref[...] + jnp.sum(x, axis=-1, keepdims=True)

    @pl.when(k == last)
    def _finalize():
        w1 = w1_ref[...].astype(jnp.float32)               # (C_red, C)
        w2 = w2_ref[...].astype(jnp.float32)               # (C, C_red)

        # Fuse the two SE passes: pooled[:, 0] = max, pooled[:, 1] = avg.
        col = jax.lax.broadcasted_iota(jnp.int32, (mx_ref.shape[0], 2), 1)
        pooled = jnp.where(col == 0, mx_ref[...], sm_ref[...] * (1.0 / hw))

        h = jnp.maximum(
            jnp.dot(w1, pooled, preferred_element_type=jnp.float32), 0.0)
        out2 = jnp.dot(w2, h, preferred_element_type=jnp.float32)  # (C, 2)

        o_ref[0] = jax.nn.sigmoid(
            out2[:, 0:1] + out2[:, 1:2]).astype(o_ref.dtype)       # (C, 1)


def channel_attention(x, w1, w2, *, target_block_bytes=4 << 20,
                      vmem_limit_bytes=None):
    """x: (N, C, H, W) float32/bf16. Returns (N, C, 1, 1) like the PyTorch module."""
    N, C, H, W = x.shape
    HW = H * W
    C_red = w1.shape[0]
    assert w1.shape == (C_red, C) and w2.shape == (C, C_red)

    if vmem_limit_bytes is None:
        vmem_limit_bytes = _default_vmem_limit_bytes()

    itemsize = jnp.dtype(x.dtype).itemsize
    # VMEM already committed: double-buffered resident weights + f32 scratch.
    weight_bytes = 2 * 2 * C_red * C * jnp.dtype(w1.dtype).itemsize
    scratch_bytes = 2 * C * 4
    headroom = 1 << 20
    # Input blocks are double-buffered by the auto-pipeline -> divide by 2.
    block_budget = max(
        C * itemsize * 128,
        min(int(target_block_bytes),
            (int(vmem_limit_bytes) - weight_bytes - scratch_bytes - headroom) // 2))
    tile_cap = max(128, _round_down(block_budget // (C * itemsize), 128))

    if HW <= tile_cap:
        tile = HW          # full spatial extent as one block (always legal)
        k_steps = 1
        has_tail = False
    else:
        tile = tile_cap
        k_steps = pl.cdiv(HW, tile)
        has_tail = (HW % tile) != 0

    x_flat = x.reshape(N, C, HW)
    kernel = functools.partial(channel_attention_kernel,
                               hw=HW, tile=tile, has_tail=has_tail)

    out = pl.pallas_call(
        kernel,
        out_shape=jax.ShapeDtypeStruct((N, C, 1), x.dtype),
        grid_spec=pltpu.PrefetchScalarGridSpec(
            num_scalar_prefetch=0,
            grid=(N, k_steps),
            in_specs=[
                pl.BlockSpec((1, C, tile), lambda n, k: (n, 0, k)),
                pl.BlockSpec((C_red, C), lambda n, k: (0, 0)),   # stays resident
                pl.BlockSpec((C, C_red), lambda n, k: (0, 0)),   # stays resident
            ],
            out_specs=pl.BlockSpec((1, C, 1), lambda n, k: (n, 0, 0)),
            scratch_shapes=[
                pltpu.VMEM((C, 1), jnp.float32),   # running max
                pltpu.VMEM((C, 1), jnp.float32),   # running sum
            ],
        ),
        compiler_params=pltpu.CompilerParams(
            dimension_semantics=("parallel", "arbitrary"),
            vmem_limit_bytes=int(vmem_limit_bytes)),
    )(x_flat, w1, w2)

    return out.reshape(N, C, 1, 1)


def channel_attention_ref(x, w1, w2):
    """Pure-JAX reference mirroring the PyTorch forward (computed in f32)."""
    xf = x.astype(jnp.float32)
    mx = jnp.max(xf, axis=(2, 3), keepdims=True)            # (N, C, 1, 1)
    av = jnp.mean(xf, axis=(2, 3), keepdims=True)           # (N, C, 1, 1)

    def se(y):                                               # y: (N, C, 1, 1)
        v = y[:, :, 0, 0]                                    # (N, C)
        h = jnp.maximum(v @ w1.T, 0.0)                       # (N, C_red)
        return h @ w2.T                                      # (N, C)

    out = jax.nn.sigmoid(se(mx) + se(av))                    # (N, C)
    return out[:, :, None, None]


if __name__ == "__main__":
    # Deterministic small example: batch=2, channels=32, reduction=16 -> hidden=2.
    N, C = 2, 32
    reduction = 16
    C_red = C // reduction

    key = jax.random.PRNGKey(0)
    kx, k1, k2, kx2 = jax.random.split(key, 4)
    # Conv2d weights [out, in, 1, 1] squeezed to [out, in].
    w1 = 0.1 * jax.random.normal(k1, (C_red, C), dtype=jnp.float32)
    w2 = 0.1 * jax.random.normal(k2, (C, C_red), dtype=jnp.float32)

    # Test 1: HW fits one block -> single spatial step per batch element.
    x1 = jax.random.normal(kx, (N, C, 16, 16), dtype=jnp.float32)
    out1 = jax.block_until_ready(channel_attention(x1, w1, w2))
    ref1 = jax.block_until_ready(channel_attention_ref(x1, w1, w2))
    assert out1.shape == (N, C, 1, 1), out1.shape
    assert jnp.allclose(out1, ref1, atol=1e-5, rtol=1e-5), (
        float(jnp.max(jnp.abs(out1 - ref1))))

    # Test 2: force a tiny block budget so the spatial reduction grid axis and
    # the masked tail tile (HW=289, tile=128 -> 3 steps, 33 valid tail lanes)
    # run; masking is pl.when-gated to the final step only.
    x2 = jax.random.normal(kx2, (N, C, 17, 17), dtype=jnp.float32)
    out2 = jax.block_until_ready(
        channel_attention(x2, w1, w2, target_block_bytes=128 * C * 4))
    ref2 = jax.block_until_ready(channel_attention_ref(x2, w1, w2))
    assert out2.shape == (N, C, 1, 1), out2.shape
    assert jnp.allclose(out2, ref2, atol=1e-5, rtol=1e-5), (
        float(jnp.max(jnp.abs(out2 - ref2))))

    # Test 3: bf16 activations fed directly (halves HBM traffic; per-tile
    # upcast to f32 inside the kernel handles precision).
    x3 = x1.astype(jnp.bfloat16)
    out3 = jax.block_until_ready(channel_attention(x3, w1, w2))
    ref3 = jax.block_until_ready(channel_attention_ref(x3, w1, w2))
    assert out3.shape == (N, C, 1, 1), out3.shape
    assert jnp.allclose(out3.astype(jnp.float32), ref3, atol=2e-2, rtol=2e-2), (
        float(jnp.max(jnp.abs(out3.astype(jnp.float32) - ref3))))

    print("KERNEL_OK")
</pallas_src>

<mosaic_0001>
module attributes {stable_mosaic.version = 11 : i64} {
  func.func @channel_attention_kernel(%arg0: i32, %arg1: i32, %arg2: memref<1x32x256xf32, #tpu.memory_space<vmem>>, %arg3: memref<2x32xf32, #tpu.memory_space<vmem>>, %arg4: memref<32x2xf32, #tpu.memory_space<vmem>>, %arg5: memref<1x32x1xf32, #tpu.memory_space<vmem>>, %arg6: memref<32x1xf32, #tpu.memory_space<vmem>>, %arg7: memref<32x1xf32, #tpu.memory_space<vmem>>) attributes {dimension_semantics = [#tpu.dimension_semantics<parallel>, #tpu.dimension_semantics<arbitrary>], iteration_bounds = array<i64: 2, 1>, scalar_prefetch = 0 : i64, scratch_operands = 2 : i64, tpu.core_type = #tpu.core_type<tc>, window_params = [{transform_indices = @transform_0, window_bounds = array<i64: 1, 32, 256>}, {pipeline_mode = #tpu.pipeline_mode<synchronous>, transform_indices = @transform_1, window_bounds = array<i64: 2, 32>}, {pipeline_mode = #tpu.pipeline_mode<synchronous>, transform_indices = @transform_2, window_bounds = array<i64: 32, 2>}, {transform_indices = @transform_3, window_bounds = array<i64: 1, 32, 1>}]} {
    %c0_i32 = arith.constant 0 : i32
    %0 = arith.cmpi eq, %arg1, %c0_i32 : i32
    %1 = arith.extui %0 : i1 to i32
    %c0_i32_0 = arith.constant 0 : i32
    %2 = arith.cmpi ne, %1, %c0_i32_0 : i32
    scf.if %2 {
      %cst_14 = arith.constant 0xFF800000 : f32
      %18 = vector.broadcast %cst_14 : f32 to vector<32x1xf32>
      %c0_15 = arith.constant 0 : index
      %c0_16 = arith.constant 0 : index
      %19 = vector.load %arg6[%c0_15, %c0_16] : memref<32x1xf32, #tpu.memory_space<vmem>>, vector<32x1xf32>
      tpu.vector_store %arg6[%c0_15, %c0_16], %18 {strides = array<i32>} : memref<32x1xf32, #tpu.memory_space<vmem>>, vector<32x1xf32>,
      %cst_17 = arith.constant 0.000000e+00 : f32
      %20 = vector.broadcast %cst_17 : f32 to vector<32x1xf32>
      %c0_18 = arith.constant 0 : index
      %c0_19 = arith.constant 0 : index
      %21 = vector.load %arg7[%c0_18, %c0_19] : memref<32x1xf32, #tpu.memory_space<vmem>>, vector<32x1xf32>
      tpu.vector_store %arg7[%c0_18, %c0_19], %20 {strides = array<i32>} : memref<32x1xf32, #tpu.memory_space<vmem>>, vector<32x1xf32>,
    } else {
    }
    %c0 = arith.constant 0 : index
    %c0_1 = arith.constant 0 : index
    %c0_2 = arith.constant 0 : index
    %3 = vector.load %arg2[%c0, %c0_1, %c0_2] : memref<1x32x256xf32, #tpu.memory_space<vmem>>, vector<1x32x256xf32>
    %4 = vector.shape_cast %3 : vector<1x32x256xf32> to vector<32x256xf32>
    %c0_3 = arith.constant 0 : index
    %c0_4 = arith.constant 0 : index
    %5 = vector.load %arg6[%c0_3, %c0_4] : memref<32x1xf32, #tpu.memory_space<vmem>>, vector<32x1xf32>
    %cst = arith.constant dense<0xFF800000> : vector<32xf32>
    %6 = vector.multi_reduction <maximumf>, %4, %cst [1] : vector<32x256xf32> to vector<32xf32>
    %7 = vector.shape_cast %6 : vector<32xf32> to vector<32x1xf32>
    %8 = arith.maximumf %5, %7 : vector<32x1xf32>
    %c0_5 = arith.constant 0 : index
    %c0_6 = arith.constant 0 : index
    %9 = vector.load %arg6[%c0_5, %c0_6] : memref<32x1xf32, #tpu.memory_space<vmem>>, vector<32x1xf32>
    tpu.vector_store %arg6[%c0_5, %c0_6], %8 {strides = array<i32>} : memref<32x1xf32, #tpu.memory_space<vmem>>, vector<32x1xf32>,
    %c0_7 = arith.constant 0 : index
    %c0_8 = arith.constant 0 : index
    %10 = vector.load %arg7[%c0_7, %c0_8] : memref<32x1xf32, #tpu.memory_space<vmem>>, vector<32x1xf32>
    %cst_9 = arith.constant dense<0.000000e+00> : vector<32xf32>
    %11 = vector.multi_reduction <add>, %4, %cst_9 [1] : vector<32x256xf32> to vector<32xf32>
    %12 = vector.shape_cast %11 : vector<32xf32> to vector<32x1xf32>
    %13 = arith.addf %10, %12 : vector<32x1xf32>
    %c0_10 = arith.constant 0 : index
    %c0_11 = arith.constant 0 : index
    %14 = vector.load %arg7[%c0_10, %c0_11] : memref<32x1xf32, #tpu.memory_space<vmem>>, vector<32x1xf32>
    tpu.vector_store %arg7[%c0_10, %c0_11], %13 {strides = array<i32>} : memref<32x1xf32, #tpu.memory_space<vmem>>, vector<32x1xf32>,
    %c0_i32_12 = arith.constant 0 : i32
    %15 = arith.cmpi eq, %arg1, %c0_i32_12 : i32
    %16 = arith.extui %15 : i1 to i32
    %c0_i32_13 = arith.constant 0 : i32
    %17 = arith.cmpi ne, %16, %c0_i32_13 : i32
    scf.if %17 {
      %c0_14 = arith.constant 0 : index
      %c0_15 = arith.constant 0 : index
      %18 = vector.load %arg3[%c0_14, %c0_15] : memref<2x32xf32, #tpu.memory_space<vmem>>, vector<2x32xf32>
      %c0_16 = arith.constant 0 : index
      %c0_17 = arith.constant 0 : index
      %19 = vector.load %arg4[%c0_16, %c0_17] : memref<32x2xf32, #tpu.memory_space<vmem>>, vector<32x2xf32>
      %20 = tpu.iota {dimensions = array<i32: 1>} : vector<32x2xi32>
      %c0_i32_18 = arith.constant 0 : i32
      %21 = vector.broadcast %c0_i32_18 : i32 to vector<32x2xi32>
      %22 = arith.cmpi eq, %20, %21 : vector<32x2xi32>
      %c0_19 = arith.constant 0 : index
      %c0_20 = arith.constant 0 : index
      %23 = vector.load %arg6[%c0_19, %c0_20] : memref<32x1xf32, #tpu.memory_space<vmem>>, vector<32x1xf32>
      %c0_21 = arith.constant 0 : index
      %c0_22 = arith.constant 0 : index
      %24 = vector.load %arg7[%c0_21, %c0_22] : memref<32x1xf32, #tpu.memory_space<vmem>>, vector<32x1xf32>
      %cst_23 = arith.constant 3.906250e-03 : f32
      %25 = vector.broadcast %cst_23 : f32 to vector<32x1xf32>
      %26 = arith.mulf %24, %25 : vector<32x1xf32>
      %27 = vector.shape_cast %23 : vector<32x1xf32> to vector<32x1xf32>
      %28 = vector.broadcast %27 : vector<32x1xf32> to vector<32x2xf32>
      %29 = vector.shape_cast %26 : vector<32x1xf32> to vector<32x1xf32>
      %30 = vector.broadcast %29 : vector<32x1xf32> to vector<32x2xf32>
      %31 = arith.select %22, %28, %30 : vector<32x2xi1>, vector<32x2xf32>
      %cst_24 = arith.constant dense<0.000000e+00> : vector<2x2xf32>
      %32 = tpu.matmul %18, %31, %cst_24 {dimension_numbers = #tpu.dot_dimension_numbers<[1], [0], [0], [1], [0, 0, 1, 1], [], []>} : vector<2x32xf32>, vector<32x2xf32>, vector<2x2xf32> -> vector<2x2xf32>
      %cst_25 = arith.constant 0.000000e+00 : f32
      %33 = vector.broadcast %cst_25 : f32 to vector<2x2xf32>
      %34 = arith.maximumf %32, %33 : vector<2x2xf32>
      %cst_26 = arith.constant dense<0.000000e+00> : vector<32x2xf32>
      %35 = tpu.matmul %19, %34, %cst_26 {dimension_numbers = #tpu.dot_dimension_numbers<[1], [0], [0], [1], [0, 0, 1, 1], [], []>} : vector<32x2xf32>, vector<2x2xf32>, vector<32x2xf32> -> vector<32x2xf32>
      %36 = vector.extract_strided_slice %35 {offsets = [0, 0], sizes = [32, 1], strides = [1, 1]} : vector<32x2xf32> to vector<32x1xf32>
      %37 = vector.extract_strided_slice %35 {offsets = [0, 1], sizes = [32, 1], strides = [1, 1]} : vector<32x2xf32> to vector<32x1xf32>
      %38 = arith.addf %36, %37 : vector<32x1xf32>
      %39 = arith.negf %38 : vector<32x1xf32>
      %40 = math.exp %39 : vector<32x1xf32>
      %cst_27 = arith.constant 1.000000e+00 : f32
      %41 = vector.broadcast %cst_27 : f32 to vector<32x1xf32>
      %42 = arith.addf %41, %40 : vector<32x1xf32>
      %43 = arith.divf %41, %42 : vector<32x1xf32>
      %c0_28 = arith.constant 0 : index
      %c0_29 = arith.constant 0 : index
      %c0_30 = arith.constant 0 : index
      %44 = vector.load %arg5[%c0_28, %c0_29, %c0_30] : memref<1x32x1xf32, #tpu.memory_space<vmem>>, vector<1x32x1xf32>
      %45 = vector.shape_cast %44 : vector<1x32x1xf32> to vector<32x1xf32>
      %46 = vector.shape_cast %43 : vector<32x1xf32> to vector<1x32x1xf32>
      tpu.vector_store %arg5[%c0_28, %c0_29, %c0_30], %46 {strides = array<i32>} : memref<1x32x1xf32, #tpu.memory_space<vmem>>, vector<1x32x1xf32>,
    } else {
    }
    return
  }
  func.func @transform_0(%arg0: i32, %arg1: i32) -> (i32, i32, i32) {
    %c0_i32 = arith.constant 0 : i32
    %c0_i32_0 = arith.constant 0 : i32
    return %arg0, %c0_i32, %arg1 : i32, i32, i32
  }
  func.func @transform_1(%arg0: i32, %arg1: i32) -> (i32, i32) {
    %c0_i32 = arith.constant 0 : i32
    %c0_i32_0 = arith.constant 0 : i32
    %c0_i32_1 = arith.constant 0 : i32
    return %c0_i32, %c0_i32_0 : i32, i32
  }
  func.func @transform_2(%arg0: i32, %arg1: i32) -> (i32, i32) {
    %c0_i32 = arith.constant 0 : i32
    %c0_i32_0 = arith.constant 0 : i32
    %c0_i32_1 = arith.constant 0 : i32
    return %c0_i32, %c0_i32_0 : i32, i32
  }
  func.func @transform_3(%arg0: i32, %arg1: i32) -> (i32, i32, i32) {
    %c0_i32 = arith.constant 0 : i32
    %c0_i32_0 = arith.constant 0 : i32
    %c0_i32_1 = arith.constant 0 : i32
    return %arg0, %c0_i32, %c0_i32_0 : i32, i32, i32
  }
}

</mosaic_0001>

<llo_original>
// kernel: tpu_custom_call.1
$region0: #{tpu_custom_call.1}
  #allocation0 [shape = 'u32[]', space=smem, size = 0x4, offset = 0x4, fixed_abs, tag = 'smem constant byte address 0x4 - core index']
  #allocation1 [shape = 'u32[144,128]{1,0:T(1,128)}', space=vmem, size = 0x12000, scoped, tag = 'internal scratch']
  #allocation2 [shape = 'f32[32,1]{1,0:T(8,128)}', space=vmem, size = 0x4000, scoped, tag = 'scratch operand']
  #allocation3 [shape = 'f32[32,1]{1,0:T(8,128)}', space=vmem, size = 0x4000, scoped, tag = 'scratch operand']
  %s0 = inlined_call_operand.hbm [shape: f32[2,32,256], index: 0, kind: input, shape index: {}]
  %s1 = inlined_call_operand.vmem [shape: f32[2,32], index: 1, kind: input, shape index: {}]
  %s2 = inlined_call_operand.vmem [shape: f32[32,2], index: 2, kind: input, shape index: {}]
  %s3 = inlined_call_operand.vmem [shape: f32[2,32,1], index: 3, kind: output, shape index: {}]
  %s4 = sld [smem:[#allocation0]]
  $region57: #{tpu_custom_call.1} parent=0
    _
  %s6 = ssub.s32 1, %s4
  %s7 = scalar_select 0, %s6, %s4
  $region1: #{tpu_custom_call.1} parent=0
    #allocation4 [shape = 'u8[65536]{0}', space=vmem, size = 0x10000, scoped, tag = 'input window, operand 0']
    #allocation5 [shape = 's32[2]{0}', space=sflag, size = 0x8, scoped, tag = 'scoped memory for tpu_custom_call.1']
    %8 = vsyncpa [#allocation5], 0
    %s9 = scalar_lea.sflag [#allocation5], 1
    %10 = vsyncpa %s9, 0
    loop: start=0, step=1, limit=4
    $region2: #{tpu_custom_call.1} parent=1 // loop_pre_header
      _
    $region3: #{tpu_custom_call.1} parent=1 // loop_header
      %s12 = sphi 0, %s16
      %p13 = scmp.ge.s32.totalorder %s12, 4
      %s19 = sphi 0, %s31
      %s20 = sphi 0, %s27
      %s21 = sphi 0, %s19
      %s22 = sphi 0, %s20
      %s23 = sphi 0, %s21
      %s24 = sphi 0, %s22
      %s36 = sphi 0, %s38
      %s39 = sphi 0, %s36
      %s40 = sphi 0, %s39
      %s56 = sphi 0, %s40
      %s60 = sphi 0, %s60
      %s62 = sphi 0, %s60
      %s63 = sphi 0, %s62
      %s77 = sphi 0, %s63
      %s81 = sphi 0, %s81
      %s83 = sphi 0, %s81
      %s84 = sphi 0, %s83
      %s98 = sphi 0, %s84
      %s104 = sphi 0, %s106
      %s107 = sphi 0, %s104
      %s108 = sphi 0, %s107
      %s124 = sphi 0, %s108
    $region4: #{tpu_custom_call.1} parent=1 // loop_header_branch
      %15 = sbr.rel (%p13) target = $region8
    $region5: #{tpu_custom_call.1} parent=1 // loop_body
      %s17 = ssub.s32 %s12, 1
      %s18 = ssub.s32 %s12, 2
      %s25 = sadd.s32 1, %s20
      %p26 = scmp.ge.s32.totalorder %s25, 1
      %s27 = scalar_select %p26, 0, %s25
      %s28 = sadd.s32 1, %s19
      %s29 = scalar_select %p26, %s28, %s19
      %p30 = scmp.ge.s32.totalorder %s29, 2
      %s31 = scalar_select %p30, 0, %s29
      %s32 = ssub.s32 %s19, %s31
      %s33 = ssub.s32 %s20, %s27
      %s34 = sor.u32 %s32, %s33
      %p35 = scmp.eq.s32.totalorder %s34, 0
      %s37 = sadd.s32 %s36, 1
      %s38 = scalar_select %p35, %s36, %s37
      %p41 = pneg %p35
      %p42 = scmp.eq.s32.totalorder %s12, 1
      %p43 = por %p41, %p42
      %p44 = scmp.ne.s32.totalorder %s36, %s39
      %p45 = scmp.eq.s32.totalorder %s12, 0
      %p46 = por %p44, %p45
      %p47 = scmp.ne.s32.totalorder %s36, %s39
      %p48 = scmp.eq.s32.totalorder %s17, 1
      %p49 = por %p47, %p48
      %p50 = scmp.ne.s32.totalorder %s39, %s40
      %p51 = scmp.eq.s32.totalorder %s17, 0
      %p52 = por %p50, %p51
      %p53 = scmp.ne.s32.totalorder %s39, %s40
      %p54 = scmp.eq.s32.totalorder %s18, 1
      %p55 = por %p53, %p54
      %p57 = scmp.ne.s32.totalorder %s40, %s56
      %p58 = scmp.eq.s32.totalorder %s18, 0
      %p59 = por %p57, %p58
      %s61 = sadd.s32 %s60, 1
      %p64 = scmp.eq.s32.totalorder %s12, 1
      %p65 = scmp.ne.s32.totalorder %s60, %s62
      %p66 = scmp.eq.s32.totalorder %s12, 0
      %p67 = por %p65, %p66
      %p68 = scmp.ne.s32.totalorder %s60, %s62
      %p69 = scmp.eq.s32.totalorder %s17, 1
      %p70 = por %p68, %p69
      %p71 = scmp.ne.s32.totalorder %s62, %s63
      %p72 = scmp.eq.s32.totalorder %s17, 0
      %p73 = por %p71, %p72
      %p74 = scmp.ne.s32.totalorder %s62, %s63
      %p75 = scmp.eq.s32.totalorder %s18, 1
      %p76 = por %p74, %p75
      %p78 = scmp.ne.s32.totalorder %s63, %s77
      %p79 = scmp.eq.s32.totalorder %s18, 0
      %p80 = por %p78, %p79
      %s82 = sadd.s32 %s81, 1
      %p85 = scmp.eq.s32.totalorder %s12, 1
      %p86 = scmp.ne.s32.totalorder %s81, %s83
      %p87 = scmp.eq.s32.totalorder %s12, 0
      %p88 = por %p86, %p87
      %p89 = scmp.ne.s32.totalorder %s81, %s83
      %p90 = scmp.eq.s32.totalorder %s17, 1
      %p91 = por %p89, %p90
      %p92 = scmp.ne.s32.totalorder %s83, %s84
      %p93 = scmp.eq.s32.totalorder %s17, 0
      %p94 = por %p92, %p93
      %p95 = scmp.ne.s32.totalorder %s83, %s84
      %p96 = scmp.eq.s32.totalorder %s18, 1
      %p97 = por %p95, %p96
      %p99 = scmp.ne.s32.totalorder %s84, %s98
      %p100 = scmp.eq.s32.totalorder %s18, 0
      %p101 = por %p99, %p100
      %s102 = ssub.s32 %s19, %s31
      %p103 = scmp.eq.s32.totalorder %s102, 0
      %s105 = sadd.s32 %s104, 1
      %s106 = scalar_select %p103, %s104, %s105
      %p109 = pneg %p103
      %p110 = scmp.eq.s32.totalorder %s12, 1
      %p111 = por %p109, %p110
      %p112 = scmp.ne.s32.totalorder %s104, %s107
      %p113 = scmp.eq.s32.totalorder %s12, 0
      %p114 = por %p112, %p113
      %p115 = scmp.ne.s32.totalorder %s104, %s107
      %p116 = scmp.eq.s32.totalorder %s17, 1
      %p117 = por %p115, %p116
      %p118 = scmp.ne.s32.totalorder %s107, %s108
      %p119 = scmp.eq.s32.totalorder %s17, 0
      %p120 = por %p118, %p119
      %p121 = scmp.ne.s32.totalorder %s107, %s108
      %p122 = scmp.eq.s32.totalorder %s18, 1
      %p123 = por %p121, %p122
      %p125 = scmp.ne.s32.totalorder %s108, %s124
      %p126 = scmp.eq.s32.totalorder %s18, 0
      %p127 = por %p125, %p126
      %p128 = scmp.le.s32.totalorder 1, %s12
      %p129 = scmp.lt.s32.totalorder %s12, 3
      %p130 = pnand %p128, %p129
      %p131 = pneg %p130
      // Predicated region
      $region9: #{tpu_custom_call.1} parent=5 // pred_check
        _
      $region10: #{tpu_custom_call.1} parent=5 // pred_check_branch
        %133 = sbr.rel (%p130) target = $region12
      $region11: #{tpu_custom_call.1} parent=5 // pred_region
        %s134 = ssub.s32 %s12, 1
        // Predicated region
        $region13: #{tpu_custom_call.1} parent=11 // pred_check
          %p135 = pneg %p73
        $region14: #{tpu_custom_call.1} parent=11 // pred_check_branch
          %137 = sbr.rel (%p135) target = $region16
        $region15: #{tpu_custom_call.1} parent=11 // pred_region
          _
        $region16: #{tpu_custom_call.1} parent=11 // pred_fallthru
          _
        // Predicated region
        $region17: #{tpu_custom_call.1} parent=11 // pred_check
          %p138 = pneg %p94
        $region18: #{tpu_custom_call.1} parent=11 // pred_check_branch
          %140 = sbr.rel (%p138) target = $region20
        $region19: #{tpu_custom_call.1} parent=11 // pred_region
          _
        $region20: #{tpu_custom_call.1} parent=11 // pred_fallthru
          _
      $region12: #{tpu_custom_call.1} parent=5 // pred_fallthru
        _
      %p141 = scmp.lt.s32.totalorder %s12, 2
      // Predicated region
      $region21: #{tpu_custom_call.1} parent=5 // pred_check
        %p142 = pneg %p141
      $region22: #{tpu_custom_call.1} parent=5 // pred_check_branch
        %144 = sbr.rel (%p142) target = $region24
      $region23: #{tpu_custom_call.1} parent=5 // pred_region
        // Predicated region
        $region25: #{tpu_custom_call.1} parent=23 // pred_check
          %p145 = pneg %p46
        $region26: #{tpu_custom_call.1} parent=23 // pred_check_branch
          %147 = sbr.rel (%p145) target = $region28
        $region27: #{tpu_custom_call.1} parent=23 // pred_region
          %s148 = sand.u32 %s36, 1
          %s149 = scalar_lea.sflag [#allocation5], %s148
          %s150 = sand.u32 %s36, 1
          %s151 = smul.addr %s150, 64
          %s152 = scalar_lea.vmem [#allocation4], %s151
          %s153 = smul.u32 2, %s20
          %s155 = ssub.s32 1024, 1024
          %156 = vsyncadd %s149, %s155
          %s157 = smul.addr %s19, 8
          %s158 = sadd.s32 %s153, %s157
          %s159 = smul.addr %s158, 128
          %s160 = scalar_lea.hbm %s0, %s159
          %s161 = sshll.u32 %s152, 4
          %s162 = int_to_ptr.vmem [resolvable:$true] %s161
          %167 = dma.hbm_to_vmem [thread:$0]  %s160, 1024, %s162, %s149, 256, 256, 16
        $region28: #{tpu_custom_call.1} parent=23 // pred_fallthru
          _
      $region24: #{tpu_custom_call.1} parent=5 // pred_fallthru
        _
      %p168 = scmp.le.s32.totalorder 1, %s12
      %p169 = scmp.lt.s32.totalorder %s12, 3
      %p170 = pnand %p168, %p169
      %p171 = pneg %p170
      // Predicated region
      $region29: #{tpu_custom_call.1} parent=5 // pred_check
        _
      $region30: #{tpu_custom_call.1} parent=5 // pred_check_branch
        %173 = sbr.rel (%p170) target = $region32
      $region31: #{tpu_custom_call.1} parent=5 // pred_region
        %s174 = ssub.s32 %s12, 1
        %s175 = sand.u32 %s39, 1
        %s176 = scalar_lea.sflag [#allocation5], %s175
        %s177 = sand.u32 %s39, 1
        %s178 = smul.addr %s177, 64
        %s179 = scalar_lea.vmem [#allocation4], %s178
        // Predicated region
        $region33: #{tpu_custom_call.1} parent=31 // pred_check
          %p180 = pneg %p52
        $region34: #{tpu_custom_call.1} parent=31 // pred_check_branch
          %182 = sbr.rel (%p180) target = $region36
        $region35: #{tpu_custom_call.1} parent=31 // pred_region
          %183 = dma.done %s176, 1024
        $region36: #{tpu_custom_call.1} parent=31 // pred_fallthru
          _
        %s184 = sand.u32 %s39, 1
        %s185 = scalar_lea.sflag [#allocation5], %s184
        %s186 = sand.u32 %s39, 1
        %s187 = smul.addr %s186, 64
        %s188 = scalar_lea.vmem [#allocation4], %s187
        %p189 = pneg %p52
        %p190 = pneg %p49
        %p191 = pneg %p73
        %p192 = pneg %p70
        %p193 = pneg %p94
        %p194 = pneg %p91
        %p195 = pneg %p120
        %p196 = pneg %p117
        %p197 = scmp.lt.s32.totalorder %s21, 1
        %s198 = scalar_select %p197, %s21, 1
        %s199 = smul.addr %s198, 4
        %s200 = smul.addr %s199, 8
        %s201 = scalar_lea.vmem %s3, %s200
        %s202 = smul.u32 2, %s22
        %p203 = scmp.lt.s32.totalorder %s21, 1
        %s204 = scalar_select %p203, %s21, 1
        %s205 = smul.addr %s204, 4
        %s206 = smul.addr %s205, 8
        %s207 = scalar_lea.vmem %s3, %s206
        %p208 = scmp.eq.s32.totalorder %s22, 0
        // Predicated region
        $region37: #{tpu_custom_call.1} parent=31 // pred_check
          %p209 = pneg %p208
        $region38: #{tpu_custom_call.1} parent=31 // pred_check_branch
          %211 = sbr.rel (%p209) target = $region40
        $region39: #{tpu_custom_call.1} parent=31 // pred_region
          %vm212 = vcmask 7168
          %213 = vst.msk [vmem:[#allocation2] sm:$0xff] %vm212, -inf
          %214 = vst.msk [vmem:[#allocation2 + $0x8] sm:$0xff] %vm212, -inf
          %215 = vst.msk [vmem:[#allocation2 + $0x10] sm:$0xff] %vm212, -inf
          %216 = vst.msk [vmem:[#allocation2 + $0x18] sm:$0xff] %vm212, -inf
          %217 = vst.msk [vmem:[#allocation3] sm:$0xff] %vm212, 0.0
          %218 = vst.msk [vmem:[#allocation3 + $0x8] sm:$0xff] %vm212, 0.0
          %219 = vst.msk [vmem:[#allocation3 + $0x10] sm:$0xff] %vm212, 0.0
          %220 = vst.msk [vmem:[#allocation3 + $0x18] sm:$0xff] %vm212, 0.0
        $region40: #{tpu_custom_call.1} parent=31 // pred_fallthru
          _
        %v221 = vld [vmem:[%s179] sm:$0xff]
        %v222 = vld [vmem:[%s179 + $0x8] sm:$0xff]
        %v223 = vld [vmem:[%s179 + $0x10] sm:$0xff]
        %v224 = vld [vmem:[%s179 + $0x18] sm:$0xff]
        %v225 = vld [vmem:[%s179 + $0x20] sm:$0xff]
        %v226 = vld [vmem:[%s179 + $0x28] sm:$0xff]
        %v227 = vld [vmem:[%s179 + $0x30] sm:$0xff]
        %v228 = vld [vmem:[%s179 + $0x38] sm:$0xff]
        %v229 = vld [vmem:[#allocation2] sm:$0xff]
        %v230 = vld [vmem:[#allocation2 + $0x8] sm:$0xff]
        %v231 = vld [vmem:[#allocation2 + $0x10] sm:$0xff]
        %v232 = vld [vmem:[#allocation2 + $0x18] sm:$0xff]
        %v233 = vmax.f32 %v221, %v222
        %234 = vmax.xlane.f32.xlu0 %v233
        %v235 = vpop.xlane.xlu0 %234
        %v236 = vmax.f32 %v223, %v224
        %237 = vmax.xlane.f32.xlu0 %v236
        %v238 = vpop.xlane.xlu0 %237
        %v239 = vmax.f32 %v225, %v226
        %240 = vmax.xlane.f32.xlu0 %v239
        %v241 = vpop.xlane.xlu0 %240
        %v242 = vmax.f32 %v227, %v228
        %243 = vmax.xlane.f32.xlu0 %v242
        %v244 = vpop.xlane.xlu0 %243
        %v245 = vmax.f32 %v229, %v235
        %v246 = vmax.f32 %v230, %v238
        %v247 = vmax.f32 %v231, %v241
        %v248 = vmax.f32 %v232, %v244
        %vm249 = vcmask 7168
        %250 = vst.msk [vmem:[#allocation2] sm:$0xff] %vm249, %v245
        %251 = vst.msk [vmem:[#allocation2 + $0x8] sm:$0xff] %vm249, %v246
        %252 = vst.msk [vmem:[#allocation2 + $0x10] sm:$0xff] %vm249, %v247
        %253 = vst.msk [vmem:[#allocation2 + $0x18] sm:$0xff] %vm249, %v248
        %v254 = vld [vmem:[#allocation3] sm:$0xff]
        %v255 = vld [vmem:[#allocation3 + $0x8] sm:$0xff]
        %v256 = vld [vmem:[#allocation3 + $0x10] sm:$0xff]
        %v257 = vld [vmem:[#allocation3 + $0x18] sm:$0xff]
        %v258 = vadd.f32 %v221, %v222
        %259 = vadd.xlane.f32.xlu0 %v258
        %v260 = vpop.xlane.xlu0 %259
        %v261 = vadd.f32 %v223, %v224
        %262 = vadd.xlane.f32.xlu0 %v261
        %v263 = vpop.xlane.xlu0 %262
        %v264 = vadd.f32 %v225, %v226
        %265 = vadd.xlane.f32.xlu0 %v264
        %v266 = vpop.xlane.xlu0 %265
        %v267 = vadd.f32 %v227, %v228
        %268 = vadd.xlane.f32.xlu0 %v267
        %v269 = vpop.xlane.xlu0 %268
        %v270 = vadd.f32 %v254, %v260
        %v271 = vadd.f32 %v255, %v263
        %v272 = vadd.f32 %v256, %v266
        %v273 = vadd.f32 %v257, %v269
        %274 = vst.msk [vmem:[#allocation3] sm:$0xff] %vm249, %v270
        %275 = vst.msk [vmem:[#allocation3 + $0x8] sm:$0xff] %vm249, %v271
        %276 = vst.msk [vmem:[#allocation3 + $0x10] sm:$0xff] %vm249, %v272
        %277 = vst.msk [vmem:[#allocation3 + $0x18] sm:$0xff] %vm249, %v273
        // Predicated region
        $region41: #{tpu_custom_call.1} parent=31 // pred_check
          %p278 = pneg %p208
        $region42: #{tpu_custom_call.1} parent=31 // pred_check_branch
          %280 = sbr.rel (%p278) target = $region44
        $region43: #{tpu_custom_call.1} parent=31 // pred_region
          %v281 = vld [vmem:[%s1] sm:$0x3]
          %v282 = vld [vmem:[%s2] sm:$0xff]
          %v283 = vld [vmem:[%s2 + $0x8] sm:$0xff]
          %v284 = vld [vmem:[%s2 + $0x10] sm:$0xff]
          %v285 = vld [vmem:[%s2 + $0x18] sm:$0xff]
          %v286 = vlaneseq
          %v287 = vand.u32 %v286, 127
          %vm288 = vcmp.eq.s32.totalorder %v287, 0
          %v289 = vld [vmem:[#allocation2] sm:$0xff]
          %v290 = vld [vmem:[#allocation2 + $0x8] sm:$0xff]
          %v291 = vld [vmem:[#allocation2 + $0x10] sm:$0xff]
          %v292 = vld [vmem:[#allocation2 + $0x18] sm:$0xff]
          %v293 = vld [vmem:[#allocation3] sm:$0xff]
          %v294 = vld [vmem:[#allocation3 + $0x8] sm:$0xff]
          %v295 = vld [vmem:[#allocation3 + $0x10] sm:$0xff]
          %v296 = vld [vmem:[#allocation3 + $0x18] sm:$0xff]
          %v297 = vmul.f32 %v293, 0.00390625
          %v298 = vmul.f32 %v294, 0.00390625
          %v299 = vmul.f32 %v295, 0.00390625
          %v300 = vmul.f32 %v296, 0.00390625
          %302 = vset.pattern.permute.xlu0 0
          %303 = vperm.xlu0 %302, %v289
          %v304 = vpop.permute.xlu0 %303
          %307 = vset.pattern.permute.xlu0 0
          %308 = vperm.xlu0 %307, %v290
          %v309 = vpop.permute.xlu0 %308
          %312 = vset.pattern.permute.xlu0 0
          %313 = vperm.xlu0 %312, %v291
          %v314 = vpop.permute.xlu0 %313
          %317 = vset.pattern.permute.xlu0 0
          %318 = vperm.xlu0 %317, %v292
          %v319 = vpop.permute.xlu0 %318
          %322 = vset.pattern.permute.xlu0 0
          %323 = vperm.xlu0 %322, %v297
          %v324 = vpop.permute.xlu0 %323
          %327 = vset.pattern.permute.xlu0 0
          %328 = vperm.xlu0 %327, %v298
          %v329 = vpop.permute.xlu0 %328
          %332 = vset.pattern.permute.xlu0 0
          %333 = vperm.xlu0 %332, %v299
          %v334 = vpop.permute.xlu0 %333
          %337 = vset.pattern.permute.xlu0 0
          %338 = vperm.xlu0 %337, %v300
          %v339 = vpop.permute.xlu0 %338
          %v341 = vsel %vm288, %v304, %v324
          %v342 = vsel %vm288, %v309, %v329
          %v343 = vsel %vm288, %v314, %v334
          %v344 = vsel %vm288, %v319, %v339
          %vm345 = vcmask 261120
          %v347 = vsel %vm345, %v281, 0
          %349 = vmatprep.subr.mxu0 0.0
          %350 = vmatpush1.msra.mxu0 %v341
          %351 = vmatprep.subr.mxu0 0.0
          %352 = vmatpush1.msra.mxu0 %v342
          %353 = vmatprep.subr.mxu0 0.0
          %354 = vmatpush1.msra.mxu0 %v343
          %355 = vmatprep.subr.mxu0 0.0
          %356 = vmatpush1.msra.mxu0 %v344
          %357 = vmatprep.subr.mxu0 0.0
          %358 = vmatpush1.msra.mxu0 0.0
          %359 = vmatprep.subr.mxu0 0.0
          %360 = vmatpush1.msra.mxu0 0.0
          %361 = vmatprep.subr.mxu0 0.0
          %362 = vmatpush1.msra.mxu0 0.0
          %363 = vmatprep.subr.mxu0 0.0
          %364 = vmatpush1.msra.mxu0 0.0
          %365 = vmatprep.subr.mxu0 0.0
          %366 = vmatpush1.msra.mxu0 0.0
          %367 = vmatprep.subr.mxu0 0.0
          %368 = vmatpush1.msra.mxu0 0.0
          %369 = vmatprep.subr.mxu0 0.0
          %370 = vmatpush1.msra.mxu0 0.0
          %371 = vmatprep.subr.mxu0 0.0
          %372 = vmatpush1.msra.mxu0 0.0
          %373 = vmatprep.subr.mxu0 0.0
          %374 = vmatpush1.msra.mxu0 0.0
          %375 = vmatprep.subr.mxu0 0.0
          %376 = vmatpush1.msra.mxu0 0.0
          %377 = vmatprep.subr.mxu0 0.0
          %378 = vmatpush1.msra.mxu0 0.0
          %379 = vmatprep.subr.mxu0 0.0
          %380 = vmatpush1.msra.mxu0 0.0
          %381 = vmatprep.subr.mxu0 0.0
          %382 = vmatpush1.msra.mxu0 0.0
          %383 = vmatprep.subr.mxu0 0.0
          %384 = vmatpush1.msra.mxu0 0.0
          %385 = vmatprep.subr.mxu0 0.0
          %386 = vmatpush1.msra.mxu0 0.0
          %387 = vmatprep.subr.mxu0 0.0
          %388 = vmatpush1.msra.mxu0 0.0
          %389 = vmatprep.subr.mxu0 0.0
          %390 = vmatpush1.msra.mxu0 0.0
          %391 = vmatprep.subr.mxu0 0.0
          %392 = vmatpush1.msra.mxu0 0.0
          %393 = vmatprep.subr.mxu0 0.0
          %394 = vmatpush1.msra.mxu0 0.0
          %395 = vmatprep.subr.mxu0 0.0
          %396 = vmatpush1.msra.mxu0 0.0
          %397 = vmatprep.subr.mxu0 0.0
          %398 = vmatpush1.msra.mxu0 0.0
          %399 = vmatprep.subr.mxu0 0.0
          %400 = vmatpush1.msra.mxu0 0.0
          %401 = vmatprep.subr.mxu0 0.0
          %402 = vmatpush1.msra.mxu0 0.0
          %403 = vmatprep.subr.mxu0 0.0
          %404 = vmatpush1.msra.mxu0 0.0
          %405 = vmatprep.subr.mxu0 0.0
          %406 = vmatpush1.msra.mxu0 0.0
          %407 = vmatprep.subr.mxu0 0.0
          %408 = vmatpush1.msra.mxu0 0.0
          %409 = vmatprep.subr.mxu0 0.0
          %410 = vmatpush1.msra.mxu0 0.0
          %411 = vmatprep.subr.mxu0 0.0
          %412 = vmatpush1.msra.mxu0 0.0
          %413 = vmatprep.mubr.f32.mxu0 0.0
          %414 = vmatmul.mubr.f32.gmra.mrb[0].mxu0 %v347
          %v415 = vpop.f32.mrb[0].mxu0
          %v416 = vadd.f32 0.0, %v415
          %v417 = vpop.f32.mrb[0].mxu0
          %418 = vdwg.mxu0
          %v419 = vmax.f32 %v416, 0.0
          %vm420 = vcmask 15360
          %v422 = vsel %vm420, %v282, 0
          %v425 = vsel %vm420, %v283, 0
          %v428 = vsel %vm420, %v284, 0
          %v431 = vsel %vm420, %v285, 0
          %vm433 = vcmask 1041408
          %v435 = vsel %vm433, %v419, 0
          %437 = vmatprep.subr.mxu0 0.0
          %438 = vmatpush1.msra.mxu0 %v435
          %439 = vmatprep.subr.mxu0 0.0
          %440 = vmatpush1.msra.mxu0 0.0
          %441 = vmatprep.subr.mxu0 0.0
          %442 = vmatpush1.msra.mxu0 0.0
          %443 = vmatprep.subr.mxu0 0.0
          %444 = vmatpush1.msra.mxu0 0.0
          %445 = vmatprep.subr.mxu0 0.0
          %446 = vmatpush1.msra.mxu0 0.0
          %447 = vmatprep.subr.mxu0 0.0
          %448 = vmatpush1.msra.mxu0 0.0
          %449 = vmatprep.subr.mxu0 0.0
          %450 = vmatpush1.msra.mxu0 0.0
          %451 = vmatprep.subr.mxu0 0.0
          %452 = vmatpush1.msra.mxu0 0.0
          %453 = vmatprep.subr.mxu0 0.0
          %454 = vmatpush1.msra.mxu0 0.0
          %455 = vmatprep.subr.mxu0 0.0
          %456 = vmatpush1.msra.mxu0 0.0
          %457 = vmatprep.subr.mxu0 0.0
          %458 = vmatpush1.msra.mxu0 0.0
          %459 = vmatprep.subr.mxu0 0.0
          %460 = vmatpush1.msra.mxu0 0.0
          %461 = vmatprep.subr.mxu0 0.0
          %462 = vmatpush1.msra.mxu0 0.0
          %463 = vmatprep.subr.mxu0 0.0
          %464 = vmatpush1.msra.mxu0 0.0
          %465 = vmatprep.subr.mxu0 0.0
          %466 = vmatpush1.msra.mxu0 0.0
          %467 = vmatprep.subr.mxu0 0.0
          %468 = vmatpush1.msra.mxu0 0.0
          %469 = vmatprep.subr.mxu0 0.0
          %470 = vmatpush1.msra.mxu0 0.0
          %471 = vmatprep.subr.mxu0 0.0
          %472 = vmatpush1.msra.mxu0 0.0
          %473 = vmatprep.subr.mxu0 0.0
          %474 = vmatpush1.msra.mxu0 0.0
          %475 = vmatprep.subr.mxu0 0.0
          %476 = vmatpush1.msra.mxu0 0.0
          %477 = vmatprep.subr.mxu0 0.0
          %478 = vmatpush1.msra.mxu0 0.0
          %479 = vmatprep.subr.mxu0 0.0
          %480 = vmatpush1.msra.mxu0 0.0
          %481 = vmatprep.subr.mxu0 0.0
          %482 = vmatpush1.msra.mxu0 0.0
          %483 = vmatprep.subr.mxu0 0.0
          %484 = vmatpush1.msra.mxu0 0.0
          %485 = vmatprep.subr.mxu0 0.0
          %486 = vmatpush1.msra.mxu0 0.0
          %487 = vmatprep.subr.mxu0 0.0
          %488 = vmatpush1.msra.mxu0 0.0
          %489 = vmatprep.subr.mxu0 0.0
          %490 = vmatpush1.msra.mxu0 0.0
          %491 = vmatprep.subr.mxu0 0.0
          %492 = vmatpush1.msra.mxu0 0.0
          %493 = vmatprep.subr.mxu0 0.0
          %494 = vmatpush1.msra.mxu0 0.0
          %495 = vmatprep.subr.mxu0 0.0
          %496 = vmatpush1.msra.mxu0 0.0
          %497 = vmatprep.subr.mxu0 0.0
          %498 = vmatpush1.msra.mxu0 0.0
          %499 = vmatprep.subr.mxu0 0.0
          %500 = vmatpush1.msra.mxu0 0.0
          %501 = vmatprep.mubr.f32.mxu0 0.0
          %502 = vmatmul.mubr.f32.gmra.mrb[0].mxu0 %v422
          %v503 = vpop.f32.mrb[0].mxu0
          %v504 = vadd.f32 0.0, %v503
          %v505 = vpop.f32.mrb[0].mxu0
          %506 = vmatprep.mubr.f32.mxu0 0.0
          %507 = vmatmul.mubr.f32.gmra.mrb[0].mxu0 %v425
          %v508 = vpop.f32.mrb[0].mxu0
          %v509 = vadd.f32 0.0, %v508
          %v510 = vpop.f32.mrb[0].mxu0
          %511 = vmatprep.mubr.f32.mxu0 0.0
          %512 = vmatmul.mubr.f32.gmra.mrb[0].mxu0 %v428
          %v513 = vpop.f32.mrb[0].mxu0
          %v514 = vadd.f32 0.0, %v513
          %v515 = vpop.f32.mrb[0].mxu0
          %516 = vmatprep.mubr.f32.mxu0 0.0
          %517 = vmatmul.mubr.f32.gmra.mrb[0].mxu0 %v431
          %v518 = vpop.f32.mrb[0].mxu0
          %v519 = vadd.f32 0.0, %v518
          %v520 = vpop.f32.mrb[0].mxu0
          %521 = vdwg.mxu0
          %526 = vrot.lane.b32.xlu0 %v504, 127
          %v527 = vpop.permute.xlu0 %526
          %528 = vrot.lane.b32.xlu0 %v509, 127
          %v529 = vpop.permute.xlu0 %528
          %530 = vrot.lane.b32.xlu0 %v514, 127
          %v531 = vpop.permute.xlu0 %530
          %532 = vrot.lane.b32.xlu0 %v519, 127
          %v533 = vpop.permute.xlu0 %532
          %v538 = vadd.f32 %v504, %v527
          %v539 = vadd.f32 %v509, %v529
          %v540 = vadd.f32 %v514, %v531
          %v541 = vadd.f32 %v519, %v533
          %v542 = vxor.u32 %v538, 2147483648
          %v543 = vxor.u32 %v539, 2147483648
          %v544 = vxor.u32 %v540, 2147483648
          %v545 = vxor.u32 %v541, 2147483648
          %v546 = vmul.f32 %v542, 1.442695
          %v547 = vpow.pop %v546
          %v548 = vmul.f32 %v543, 1.442695
          %v549 = vpow.pop %v548
          %v550 = vmul.f32 %v544, 1.442695
          %v551 = vpow.pop %v550
          %v552 = vmul.f32 %v545, 1.442695
          %v553 = vpow.pop %v552
          %v554 = vadd.f32 %v547, 1.0
          %v555 = vadd.f32 %v549, 1.0
          %v556 = vadd.f32 %v551, 1.0
          %v557 = vadd.f32 %v553, 1.0
          %v558 = vrcp.pop %v554
          %v559 = vmul.f32 1.0, %v558
          %v560 = vrcp.pop %v555
          %v561 = vmul.f32 1.0, %v560
          %v562 = vrcp.pop %v556
          %v563 = vmul.f32 1.0, %v562
          %v564 = vrcp.pop %v557
          %v565 = vmul.f32 1.0, %v564
          %566 = vst.msk [vmem:[%s207] sm:$0xff] %vm249, %v559
          %567 = vst.msk [vmem:[%s207 + $0x8] sm:$0xff] %vm249, %v561
          %568 = vst.msk [vmem:[%s207 + $0x10] sm:$0xff] %vm249, %v563
          %569 = vst.msk [vmem:[%s207 + $0x18] sm:$0xff] %vm249, %v565
        $region44: #{tpu_custom_call.1} parent=31 // pred_fallthru
          _
        %p570 = scmp.lt.s32.totalorder %s21, 1
        %s571 = scalar_select %p570, %s21, 1
        %s572 = smul.addr %s571, 4
        %s573 = smul.addr %s572, 8
        %s574 = scalar_lea.vmem %s3, %s573
        // Predicated region
        $region45: #{tpu_custom_call.1} parent=31 // pred_check
          %p575 = pneg %p117
        $region46: #{tpu_custom_call.1} parent=31 // pred_check_branch
          %577 = sbr.rel (%p575) target = $region48
        $region47: #{tpu_custom_call.1} parent=31 // pred_region
          _
        $region48: #{tpu_custom_call.1} parent=31 // pred_fallthru
          _
      $region32: #{tpu_custom_call.1} parent=5 // pred_fallthru
        _
      %p578 = scmp.le.s32.totalorder 2, %s12
      // Predicated region
      $region49: #{tpu_custom_call.1} parent=5 // pred_check
        %p579 = pneg %p578
      $region50: #{tpu_custom_call.1} parent=5 // pred_check_branch
        %581 = sbr.rel (%p579) target = $region52
      $region51: #{tpu_custom_call.1} parent=5 // pred_region
        %s582 = ssub.s32 %s12, 2
        // Predicated region
        $region53: #{tpu_custom_call.1} parent=51 // pred_check
          %p583 = pneg %p123
        $region54: #{tpu_custom_call.1} parent=51 // pred_check_branch
          %585 = sbr.rel (%p583) target = $region56
        $region55: #{tpu_custom_call.1} parent=51 // pred_region
          %p586 = scmp.lt.s32.totalorder %s23, 1
          %s587 = scalar_select %p586, %s23, 1
          %s588 = smul.addr %s587, 4
          %s589 = smul.addr %s588, 8
          %s590 = scalar_lea.vmem %s3, %s589
        $region56: #{tpu_custom_call.1} parent=51 // pred_fallthru
          _
      $region52: #{tpu_custom_call.1} parent=5 // pred_fallthru
        _
    $region6: #{tpu_custom_call.1} parent=1 // loop_footer
      %s16 = sadd.s32 1, %s12
    $region7: #{tpu_custom_call.1} parent=1 // loop_footer_branch
      %11 = sbr.rel target = $region3
    $region8: #{tpu_custom_call.1} parent=1 // loop_exit
      _
    %591 = vsyncpa [#allocation5], 1
    %s592 = scalar_lea.sflag [#allocation5], 1
    %593 = vsyncpa %s592, 1

</llo_original>
